<compile_context>
chip_gen: v7x
topology: tpu7x:2x2x1
jax: 0.10.0
libtpu: 0.0.40
codegen_flags: <defaults>
</compile_context>

<pallas_src>
import jax
import jax.numpy as jnp
from jax import lax
from jax.experimental import pallas as pl
from jax.experimental.pallas import tpu as pltpu


def _round_up(x, m):
    return ((x + m - 1) // m) * m


def ce_loss(pred_nchw, target_nchw, *, max_tile_rows=1024, num_cores=2,
            assume_binary_targets=False):
    """Sum over channels of mean-reduced binary cross entropy.

    pred_nchw, target_nchw: (N, C, H, W), values in [0, 1].  float32 or
    bfloat16 (bf16 halves HBM traffic; upcast to f32 happens in-kernel).
    Returns a float32 scalar.
    """
    N, C, H, W = pred_nchw.shape
    total = N * C * H * W
    per_channel_elems = N * H * W  # mean denominator per channel

    p_flat = jnp.ravel(pred_nchw)    # contiguous flatten: layout no-op
    t_flat = jnp.ravel(target_nchw)

    # Lane width: largest of 512/256/128 dividing the element count so the
    # 2-D view below is a pure reshape (no extra HBM pass).
    lanes = None
    for cand in (512, 256, 128):
        if total % cand == 0:
            lanes = cand
            break
    if lanes is None:
        # TODO(synk): rare ragged fallback (total not a multiple of 128) pads
        # with (p=1, t=1) -> exactly-zero extra loss, at the cost of one extra
        # HBM copy of the inputs.
        lanes = 128
        pad = _round_up(total, lanes) - total
        p_flat = jnp.pad(p_flat, (0, pad), constant_values=1)
        t_flat = jnp.pad(t_flat, (0, pad), constant_values=1)
        total = total + pad

    rows = total // lanes
    p2 = p_flat.reshape(rows, lanes)
    t2 = t_flat.reshape(rows, lanes)

    # Row tile: big enough to amortize the ~0.35us per-grid-step overhead,
    # small enough that 2 inputs x 2 pipeline buffers fit scoped VMEM on all
    # generations (1024 x 512 x 4B = 2 MiB per f32 block -> 8 MiB buffered).
    tile_rows = min(max_tile_rows, _round_up(rows, 16))
    if tile_rows > rows:
        tile_rows = rows  # tiny input: one block == full array (always legal)

    num_row_tiles = -(-rows // tile_rows)
    inner_tiles = -(-num_row_tiles // num_cores)
    padded_tiles = inner_tiles * num_cores

    # Masking needed iff the last tile reads past `rows` (ragged) or a core is
    # handed a duplicate (clamped) tile because the grid was padded.
    needs_mask = (rows % tile_rows != 0) or (padded_tiles != num_row_tiles)

    # Per-step accumulation folds each tile down to one vreg-row of sublanes
    # (pure VPU adds), so only (8, lanes) is read-modified-written per step.
    acc_rows = 8 if tile_rows % 8 == 0 else tile_rows

    def kernel(p_ref, t_ref, o_ref):
        c = pl.program_id(0)   # core (parallel) axis
        j = pl.program_id(1)   # row-tile (arbitrary / reduction) axis

        @pl.when(j == 0)
        def _():
            o_ref[...] = jnp.zeros_like(o_ref)

        p = p_ref[...].astype(jnp.float32)
        t = t_ref[...].astype(jnp.float32)

        if needs_mask:
            tile_idx = c * inner_tiles + j            # un-clamped tile id
            limit = rows - tile_idx * tile_rows       # # valid rows this tile
            row_id = lax.broadcasted_iota(jnp.int32, (tile_rows, 1), 0)
            valid = row_id < limit
            # (p=1, t=1) gives exactly zero BCE -> masked rows contribute 0.
            p = jnp.where(valid, p, 1.0)
            t = jnp.where(valid, t, 1.0)

        if assume_binary_targets:
            # One log per element (EUP relief on v7x); only valid for {0,1} t.
            loss = -jnp.maximum(jnp.log(jnp.where(t > 0.5, p, 1.0 - p)), -100.0)
        else:
            # PyTorch F.binary_cross_entropy clamps the log terms at -100.
            log_p = jnp.maximum(jnp.log(p), -100.0)
            log_1mp = jnp.maximum(jnp.log(1.0 - p), -100.0)
            # -(t*log_p + (1-t)*log_1mp), rewritten to save a mul + sub.
            loss = -(t * (log_p - log_1mp) + log_1mp)

        if tile_rows % 8 == 0:
            partial = loss.reshape(tile_rows // 8, 8, lanes).sum(axis=0)
        else:
            partial = loss
        o_ref[...] += partial[None]

    def in_map(c, j):
        tile = c * inner_tiles + j
        if padded_tiles != num_row_tiles:
            tile = jnp.minimum(tile, num_row_tiles - 1)  # keep block in bounds
        return (tile, 0)

    out = pl.pallas_call(
        kernel,
        out_shape=jax.ShapeDtypeStruct((num_cores, acc_rows, lanes), jnp.float32),
        grid_spec=pltpu.PrefetchScalarGridSpec(
            num_scalar_prefetch=0,
            grid=(num_cores, inner_tiles),
            in_specs=[
                pl.BlockSpec((tile_rows, lanes), in_map),
                pl.BlockSpec((tile_rows, lanes), in_map),
            ],
            # Per-core output block, resident across the inner reduction axis
            # (acts as the accumulator; no scratch needed).
            out_specs=pl.BlockSpec((1, acc_rows, lanes), lambda c, j: (c, 0, 0)),
        ),
        compiler_params=pltpu.CompilerParams(
            dimension_semantics=("parallel", "arbitrary"),
            vmem_limit_bytes=32 * 1024 * 1024,
        ),
    )(p2, t2)

    # Tiny final reduce (<= 2*8*512 f32) + hoisted scaling in plain XLA.
    return jnp.sum(out) * (1.0 / per_channel_elems)


def _reference_ce(pred, target):
    """Pure-JAX reference for validation."""
    p = pred.astype(jnp.float32)
    t = target.astype(jnp.float32)
    log_p = jnp.maximum(jnp.log(p), -100.0)
    log_1mp = jnp.maximum(jnp.log(1.0 - p), -100.0)
    loss = -(t * log_p + (1.0 - t) * log_1mp)
    per_c = jnp.mean(loss, axis=(0, 2, 3))   # per-channel mean
    return jnp.sum(per_c)                    # summed over channels


if __name__ == "__main__":
    key = jax.random.PRNGKey(0)
    k1, k2, k3, k4 = jax.random.split(key, 4)

    # Small shape consistent with the module (N, C, H, W).
    N, C, H, W = 2, 4, 16, 16
    pred = jax.nn.sigmoid(jax.random.normal(k1, (N, C, H, W), dtype=jnp.float32))
    target = jax.random.uniform(k2, (N, C, H, W), dtype=jnp.float32)

    out = ce_loss(pred, target)
    out = jax.block_until_ready(out)
    ref = _reference_ce(pred, target)
    assert jnp.allclose(out, ref, rtol=1e-4, atol=1e-5), (out, ref)

    # Second small case exercising the ragged-last-tile + duplicate-tile
    # masking path (rows % tile_rows != 0 and num_row_tiles % num_cores != 0).
    N2, C2, H2, W2 = 2, 4, 36, 64
    pred2 = jax.nn.sigmoid(jax.random.normal(k3, (N2, C2, H2, W2), dtype=jnp.float32))
    target2 = jax.random.uniform(k4, (N2, C2, H2, W2), dtype=jnp.float32)
    out2 = ce_loss(pred2, target2, max_tile_rows=16)
    out2 = jax.block_until_ready(out2)
    ref2 = _reference_ce(pred2, target2)
    assert jnp.allclose(out2, ref2, rtol=1e-4, atol=1e-5), (out2, ref2)

    print("KERNEL_OK")
</pallas_src>

<mosaic_0001>
module attributes {stable_mosaic.version = 11 : i64} {
  func.func @kernel(%arg0: i32, %arg1: i32, %arg2: memref<4x512xf32, #tpu.memory_space<vmem>>, %arg3: memref<4x512xf32, #tpu.memory_space<vmem>>, %arg4: memref<1x4x512xf32, #tpu.memory_space<vmem>>) attributes {dimension_semantics = [#tpu.dimension_semantics<parallel>, #tpu.dimension_semantics<arbitrary>], iteration_bounds = array<i64: 2, 1>, scalar_prefetch = 0 : i64, scratch_operands = 0 : i64, tpu.core_type = #tpu.core_type<tc>, window_params = [{transform_indices = @transform_0, window_bounds = array<i64: 4, 512>}, {transform_indices = @transform_1, window_bounds = array<i64: 4, 512>}, {transform_indices = @transform_2, window_bounds = array<i64: 1, 4, 512>}]} {
    %c0_i32 = arith.constant 0 : i32
    %0 = arith.cmpi eq, %arg1, %c0_i32 : i32
    %1 = arith.extui %0 : i1 to i32
    %c0_i32_0 = arith.constant 0 : i32
    %2 = arith.cmpi ne, %1, %c0_i32_0 : i32
    scf.if %2 {
      %cst_16 = arith.constant 0.000000e+00 : f32
      %37 = vector.broadcast %cst_16 : f32 to vector<1x4x512xf32>
      %c0_17 = arith.constant 0 : index
      %c0_18 = arith.constant 0 : index
      %c0_19 = arith.constant 0 : index
      %38 = vector.load %arg4[%c0_17, %c0_18, %c0_19] : memref<1x4x512xf32, #tpu.memory_space<vmem>>, vector<1x4x512xf32>
      tpu.vector_store %arg4[%c0_17, %c0_18, %c0_19], %37 {strides = array<i32>} : memref<1x4x512xf32, #tpu.memory_space<vmem>>, vector<1x4x512xf32>,
    } else {
    }
    %c0 = arith.constant 0 : index
    %c0_1 = arith.constant 0 : index
    %3 = vector.load %arg2[%c0, %c0_1] : memref<4x512xf32, #tpu.memory_space<vmem>>, vector<4x512xf32>
    %c0_2 = arith.constant 0 : index
    %c0_3 = arith.constant 0 : index
    %4 = vector.load %arg3[%c0_2, %c0_3] : memref<4x512xf32, #tpu.memory_space<vmem>>, vector<4x512xf32>
    %c1_i32 = arith.constant 1 : i32
    %5 = arith.muli %arg0, %c1_i32 : i32
    %6 = arith.addi %5, %arg1 : i32
    %c4_i32 = arith.constant 4 : i32
    %7 = arith.muli %6, %c4_i32 : i32
    %c4_i32_4 = arith.constant 4 : i32
    %8 = arith.subi %c4_i32_4, %7 : i32
    %9 = tpu.iota {dimensions = array<i32: 0>} : vector<4x1xi32>
    %10 = vector.broadcast %8 : i32 to vector<4x1xi32>
    %11 = arith.cmpi slt, %9, %10 : vector<4x1xi32>
    %cst = arith.constant 1.000000e+00 : f32
    %12 = vector.shape_cast %11 : vector<4x1xi1> to vector<4x1xi1>
    %13 = vector.broadcast %12 : vector<4x1xi1> to vector<4x512xi1>
    %14 = vector.broadcast %cst : f32 to vector<4x512xf32>
    %15 = arith.select %13, %3, %14 : vector<4x512xi1>, vector<4x512xf32>
    %cst_5 = arith.constant 1.000000e+00 : f32
    %16 = vector.shape_cast %11 : vector<4x1xi1> to vector<4x1xi1>
    %17 = vector.broadcast %16 : vector<4x1xi1> to vector<4x512xi1>
    %18 = vector.broadcast %cst_5 : f32 to vector<4x512xf32>
    %19 = arith.select %17, %4, %18 : vector<4x512xi1>, vector<4x512xf32>
    %20 = math.log %15 : vector<4x512xf32>
    %cst_6 = arith.constant -1.000000e+02 : f32
    %21 = vector.broadcast %cst_6 : f32 to vector<4x512xf32>
    %22 = arith.maximumf %20, %21 : vector<4x512xf32>
    %cst_7 = arith.constant 1.000000e+00 : f32
    %23 = vector.broadcast %cst_7 : f32 to vector<4x512xf32>
    %24 = arith.subf %23, %15 : vector<4x512xf32>
    %25 = math.log %24 : vector<4x512xf32>
    %cst_8 = arith.constant -1.000000e+02 : f32
    %26 = vector.broadcast %cst_8 : f32 to vector<4x512xf32>
    %27 = arith.maximumf %25, %26 : vector<4x512xf32>
    %28 = arith.subf %22, %27 : vector<4x512xf32>
    %29 = arith.mulf %19, %28 : vector<4x512xf32>
    %30 = arith.addf %29, %27 : vector<4x512xf32>
    %cst_9 = arith.constant 0.000000e+00 : f32
    %31 = vector.broadcast %cst_9 : f32 to vector<4x512xf32>
    %32 = arith.subf %31, %30 : vector<4x512xf32>
    %c0_10 = arith.constant 0 : index
    %c0_11 = arith.constant 0 : index
    %c0_12 = arith.constant 0 : index
    %33 = vector.load %arg4[%c0_10, %c0_11, %c0_12] : memref<1x4x512xf32, #tpu.memory_space<vmem>>, vector<1x4x512xf32>
    %34 = vector.shape_cast %32 : vector<4x512xf32> to vector<1x4x512xf32>
    %35 = arith.addf %33, %34 : vector<1x4x512xf32>
    %c0_13 = arith.constant 0 : index
    %c0_14 = arith.constant 0 : index
    %c0_15 = arith.constant 0 : index
    %36 = vector.load %arg4[%c0_13, %c0_14, %c0_15] : memref<1x4x512xf32, #tpu.memory_space<vmem>>, vector<1x4x512xf32>
    tpu.vector_store %arg4[%c0_13, %c0_14, %c0_15], %35 {strides = array<i32>} : memref<1x4x512xf32, #tpu.memory_space<vmem>>, vector<1x4x512xf32>,
    return
  }
  func.func @transform_0(%arg0: i32, %arg1: i32) -> (i32, i32) {
    %c1_i32 = arith.constant 1 : i32
    %0 = arith.muli %arg0, %c1_i32 : i32
    %1 = arith.addi %0, %arg1 : i32
    %c0_i32 = arith.constant 0 : i32
    %2 = arith.minsi %1, %c0_i32 : i32
    %c0_i32_0 = arith.constant 0 : i32
    %c0_i32_1 = arith.constant 0 : i32
    return %2, %c0_i32_0 : i32, i32
  }
  func.func @transform_1(%arg0: i32, %arg1: i32) -> (i32, i32) {
    %c1_i32 = arith.constant 1 : i32
    %0 = arith.muli %arg0, %c1_i32 : i32
    %1 = arith.addi %0, %arg1 : i32
    %c0_i32 = arith.constant 0 : i32
    %2 = arith.minsi %1, %c0_i32 : i32
    %c0_i32_0 = arith.constant 0 : i32
    %c0_i32_1 = arith.constant 0 : i32
    return %2, %c0_i32_0 : i32, i32
  }
  func.func @transform_2(%arg0: i32, %arg1: i32) -> (i32, i32, i32) {
    %c0_i32 = arith.constant 0 : i32
    %c0_i32_0 = arith.constant 0 : i32
    %c0_i32_1 = arith.constant 0 : i32
    return %arg0, %c0_i32, %c0_i32_0 : i32, i32, i32
  }
}

</mosaic_0001>

<llo_original>
// kernel: tpu_custom_call.1
$region0: #{tpu_custom_call.1}
  #allocation0 [shape = 'u32[]', space=smem, size = 0x4, offset = 0x4, fixed_abs, tag = 'smem constant byte address 0x4 - core index']
  #allocation1 [shape = 'u32[144,128]{1,0:T(1,128)}', space=vmem, size = 0x12000, scoped, tag = 'internal scratch']
  %s0 = inlined_call_operand.hbm [shape: f32[4,512], index: 0, kind: input, shape index: {}]
  %s1 = inlined_call_operand.hbm [shape: f32[4,512], index: 1, kind: input, shape index: {}]
  %s2 = inlined_call_operand.hbm [shape: f32[2,4,512], index: 2, kind: output, shape index: {}]
  %s3 = sld [smem:[#allocation0]]
  $region53: #{tpu_custom_call.1} parent=0
    _
  %s5 = ssub.s32 1, %s3
  %s6 = scalar_select 0, %s5, %s3
  $region1: #{tpu_custom_call.1} parent=0
    #allocation2 [shape = 'u8[16384]{0}', space=vmem, size = 0x4000, scoped, tag = 'input window, operand 0']
    #allocation3 [shape = 's32[2]{0}', space=sflag, size = 0x8, scoped, tag = 'scoped memory for tpu_custom_call.1']
    #allocation4 [shape = 's32[2]{0}', space=sflag, size = 0x8, scoped, tag = 'scoped memory for tpu_custom_call.1']
    #allocation5 [shape = 'u8[16384]{0}', space=vmem, size = 0x4000, scoped, tag = 'input window, operand 1']
    #allocation6 [shape = 's32[2]{0}', space=sflag, size = 0x8, scoped, tag = 'scoped memory for tpu_custom_call.1']
    #allocation7 [shape = 'u8[16384]{0}', space=vmem, size = 0x4000, scoped, tag = 'output window, operand 0']
    %7 = vsyncpa [#allocation3], 0
    %s8 = scalar_lea.sflag [#allocation3], 1
    %9 = vsyncpa %s8, 0
    %10 = vsyncpa [#allocation6], 0
    %s11 = scalar_lea.sflag [#allocation6], 1
    %12 = vsyncpa %s11, 0
    %13 = vsyncpa [#allocation4], 0
    %s14 = scalar_lea.sflag [#allocation4], 1
    %15 = vsyncpa %s14, 0
    loop: start=0, step=1, limit=4
    $region2: #{tpu_custom_call.1} parent=1 // loop_pre_header
      _
    $region3: #{tpu_custom_call.1} parent=1 // loop_header
      %s17 = sphi 0, %s21
      %p18 = scmp.ge.s32.totalorder %s17, 4
      %s24 = sphi 0, %s36
      %s25 = sphi 0, %s32
      %s26 = sphi 0, %s24
      %s27 = sphi 0, %s25
      %s28 = sphi 0, %s26
      %s29 = sphi 0, %s27
      %s45 = sphi 0, %s47
      %s48 = sphi 0, %s45
      %s49 = sphi 0, %s48
      %s65 = sphi 0, %s49
      %s77 = sphi 0, %s79
      %s80 = sphi 0, %s77
      %s81 = sphi 0, %s80
      %s97 = sphi 0, %s81
      %s103 = sphi 0, %s105
      %s106 = sphi 0, %s103
      %s107 = sphi 0, %s106
      %s123 = sphi 0, %s107
    $region4: #{tpu_custom_call.1} parent=1 // loop_header_branch
      %20 = sbr.rel (%p18) target = $region8
    $region5: #{tpu_custom_call.1} parent=1 // loop_body
      %s22 = ssub.s32 %s17, 1
      %s23 = ssub.s32 %s17, 2
      %s30 = sadd.s32 1, %s25
      %p31 = scmp.ge.s32.totalorder %s30, 1
      %s32 = scalar_select %p31, 0, %s30
      %s33 = sadd.s32 1, %s24
      %s34 = scalar_select %p31, %s33, %s24
      %p35 = scmp.ge.s32.totalorder %s34, 2
      %s36 = scalar_select %p35, 0, %s34
      %s37 = sadd.s32 %s24, %s25
      %p38 = scmp.lt.s32.totalorder %s37, 0
      %s39 = scalar_select %p38, %s37, 0
      %s40 = sadd.s32 %s36, %s32
      %p41 = scmp.lt.s32.totalorder %s40, 0
      %s42 = scalar_select %p41, %s40, 0
      %s43 = ssub.s32 %s39, %s42
      %p44 = scmp.eq.s32.totalorder %s43, 0
      %s46 = sadd.s32 %s45, 1
      %s47 = scalar_select %p44, %s45, %s46
      %p50 = pneg %p44
      %p51 = scmp.eq.s32.totalorder %s17, 1
      %p52 = por %p50, %p51
      %p53 = scmp.ne.s32.totalorder %s45, %s48
      %p54 = scmp.eq.s32.totalorder %s17, 0
      %p55 = por %p53, %p54
      %p56 = scmp.ne.s32.totalorder %s45, %s48
      %p57 = scmp.eq.s32.totalorder %s22, 1
      %p58 = por %p56, %p57
      %p59 = scmp.ne.s32.totalorder %s48, %s49
      %p60 = scmp.eq.s32.totalorder %s22, 0
      %p61 = por %p59, %p60
      %p62 = scmp.ne.s32.totalorder %s48, %s49
      %p63 = scmp.eq.s32.totalorder %s23, 1
      %p64 = por %p62, %p63
      %p66 = scmp.ne.s32.totalorder %s49, %s65
      %p67 = scmp.eq.s32.totalorder %s23, 0
      %p68 = por %p66, %p67
      %s69 = sadd.s32 %s24, %s25
      %p70 = scmp.lt.s32.totalorder %s69, 0
      %s71 = scalar_select %p70, %s69, 0
      %s72 = sadd.s32 %s36, %s32
      %p73 = scmp.lt.s32.totalorder %s72, 0
      %s74 = scalar_select %p73, %s72, 0
      %s75 = ssub.s32 %s71, %s74
      %p76 = scmp.eq.s32.totalorder %s75, 0
      %s78 = sadd.s32 %s77, 1
      %s79 = scalar_select %p76, %s77, %s78
      %p82 = pneg %p76
      %p83 = scmp.eq.s32.totalorder %s17, 1
      %p84 = por %p82, %p83
      %p85 = scmp.ne.s32.totalorder %s77, %s80
      %p86 = scmp.eq.s32.totalorder %s17, 0
      %p87 = por %p85, %p86
      %p88 = scmp.ne.s32.totalorder %s77, %s80
      %p89 = scmp.eq.s32.totalorder %s22, 1
      %p90 = por %p88, %p89
      %p91 = scmp.ne.s32.totalorder %s80, %s81
      %p92 = scmp.eq.s32.totalorder %s22, 0
      %p93 = por %p91, %p92
      %p94 = scmp.ne.s32.totalorder %s80, %s81
      %p95 = scmp.eq.s32.totalorder %s23, 1
      %p96 = por %p94, %p95
      %p98 = scmp.ne.s32.totalorder %s81, %s97
      %p99 = scmp.eq.s32.totalorder %s23, 0
      %p100 = por %p98, %p99
      %s101 = ssub.s32 %s24, %s36
      %p102 = scmp.eq.s32.totalorder %s101, 0
      %s104 = sadd.s32 %s103, 1
      %s105 = scalar_select %p102, %s103, %s104
      %p108 = pneg %p102
      %p109 = scmp.eq.s32.totalorder %s17, 1
      %p110 = por %p108, %p109
      %p111 = scmp.ne.s32.totalorder %s103, %s106
      %p112 = scmp.eq.s32.totalorder %s17, 0
      %p113 = por %p111, %p112
      %p114 = scmp.ne.s32.totalorder %s103, %s106
      %p115 = scmp.eq.s32.totalorder %s22, 1
      %p116 = por %p114, %p115
      %p117 = scmp.ne.s32.totalorder %s106, %s107
      %p118 = scmp.eq.s32.totalorder %s22, 0
      %p119 = por %p117, %p118
      %p120 = scmp.ne.s32.totalorder %s106, %s107
      %p121 = scmp.eq.s32.totalorder %s23, 1
      %p122 = por %p120, %p121
      %p124 = scmp.ne.s32.totalorder %s107, %s123
      %p125 = scmp.eq.s32.totalorder %s23, 0
      %p126 = por %p124, %p125
      %p127 = scmp.le.s32.totalorder 1, %s17
      %p128 = scmp.lt.s32.totalorder %s17, 3
      %p129 = pnand %p127, %p128
      %p130 = pneg %p129
      // Predicated region
      $region9: #{tpu_custom_call.1} parent=5 // pred_check
        _
      $region10: #{tpu_custom_call.1} parent=5 // pred_check_branch
        %132 = sbr.rel (%p129) target = $region12
      $region11: #{tpu_custom_call.1} parent=5 // pred_region
        %s133 = ssub.s32 %s17, 1
      $region12: #{tpu_custom_call.1} parent=5 // pred_fallthru
        _
      %p134 = scmp.lt.s32.totalorder %s17, 2
      // Predicated region
      $region13: #{tpu_custom_call.1} parent=5 // pred_check
        %p135 = pneg %p134
      $region14: #{tpu_custom_call.1} parent=5 // pred_check_branch
        %137 = sbr.rel (%p135) target = $region16
      $region15: #{tpu_custom_call.1} parent=5 // pred_region
        // Predicated region
        $region17: #{tpu_custom_call.1} parent=15 // pred_check
          %p138 = pneg %p55
        $region18: #{tpu_custom_call.1} parent=15 // pred_check_branch
          %140 = sbr.rel (%p138) target = $region20
        $region19: #{tpu_custom_call.1} parent=15 // pred_region
          %s141 = sand.u32 %s45, 1
          %s142 = scalar_lea.sflag [#allocation3], %s141
          %s143 = sand.u32 %s45, 1
          %s144 = smul.addr %s143, 16
          %s145 = scalar_lea.vmem [#allocation2], %s144
          %s146 = sadd.s32 %s24, %s25
          %p147 = scmp.lt.s32.totalorder %s146, 0
          %s148 = scalar_select %p147, %s146, 0
          %s150 = ssub.s32 256, 256
          %151 = vsyncadd %s142, %s150
          %s152 = smul.addr %s148, 4
          %s153 = smul.addr %s152, 64
          %s154 = scalar_lea.hbm %s0, %s153
          %s156 = sshll.u32 %s145, 4
          %s157 = int_to_ptr.vmem [resolvable:$true] %s156
          %159 = dma.hbm_to_vmem [thread:$0]  %s154, 256, %s157, %s142
        $region20: #{tpu_custom_call.1} parent=15 // pred_fallthru
          _
        // Predicated region
        $region21: #{tpu_custom_call.1} parent=15 // pred_check
          %p160 = pneg %p87
        $region22: #{tpu_custom_call.1} parent=15 // pred_check_branch
          %162 = sbr.rel (%p160) target = $region24
        $region23: #{tpu_custom_call.1} parent=15 // pred_region
          %s163 = sand.u32 %s77, 1
          %s164 = scalar_lea.sflag [#allocation6], %s163
          %s165 = sand.u32 %s77, 1
          %s166 = smul.addr %s165, 16
          %s167 = scalar_lea.vmem [#allocation5], %s166
          %s168 = sadd.s32 %s24, %s25
          %p169 = scmp.lt.s32.totalorder %s168, 0
          %s170 = scalar_select %p169, %s168, 0
          %s172 = ssub.s32 256, 256
          %173 = vsyncadd %s164, %s172
          %s174 = smul.addr %s170, 4
          %s175 = smul.addr %s174, 64
          %s176 = scalar_lea.hbm %s1, %s175
          %s178 = sshll.u32 %s167, 4
          %s179 = int_to_ptr.vmem [resolvable:$true] %s178
          %181 = dma.hbm_to_vmem [thread:$0]  %s176, 256, %s179, %s164
        $region24: #{tpu_custom_call.1} parent=15 // pred_fallthru
          _
      $region16: #{tpu_custom_call.1} parent=5 // pred_fallthru
        _
      %p182 = scmp.le.s32.totalorder 1, %s17
      %p183 = scmp.lt.s32.totalorder %s17, 3
      %p184 = pnand %p182, %p183
      %p185 = pneg %p184
      // Predicated region
      $region25: #{tpu_custom_call.1} parent=5 // pred_check
        _
      $region26: #{tpu_custom_call.1} parent=5 // pred_check_branch
        %187 = sbr.rel (%p184) target = $region28
      $region27: #{tpu_custom_call.1} parent=5 // pred_region
        %s188 = ssub.s32 %s17, 1
        %s189 = sand.u32 %s48, 1
        %s190 = scalar_lea.sflag [#allocation3], %s189
        %s191 = sand.u32 %s48, 1
        %s192 = smul.addr %s191, 16
        %s193 = scalar_lea.vmem [#allocation2], %s192
        // Predicated region
        $region29: #{tpu_custom_call.1} parent=27 // pred_check
          %p194 = pneg %p61
        $region30: #{tpu_custom_call.1} parent=27 // pred_check_branch
          %196 = sbr.rel (%p194) target = $region32
        $region31: #{tpu_custom_call.1} parent=27 // pred_region
          %197 = dma.done %s190, 256
        $region32: #{tpu_custom_call.1} parent=27 // pred_fallthru
          _
        %s198 = sand.u32 %s80, 1
        %s199 = scalar_lea.sflag [#allocation6], %s198
        %s200 = sand.u32 %s80, 1
        %s201 = smul.addr %s200, 16
        %s202 = scalar_lea.vmem [#allocation5], %s201
        // Predicated region
        $region33: #{tpu_custom_call.1} parent=27 // pred_check
          %p203 = pneg %p93
        $region34: #{tpu_custom_call.1} parent=27 // pred_check_branch
          %205 = sbr.rel (%p203) target = $region36
        $region35: #{tpu_custom_call.1} parent=27 // pred_region
          %206 = dma.done %s199, 256
        $region36: #{tpu_custom_call.1} parent=27 // pred_fallthru
          _
        %s207 = sand.u32 %s48, 1
        %s208 = scalar_lea.sflag [#allocation3], %s207
        %s209 = sand.u32 %s48, 1
        %s210 = smul.addr %s209, 16
        %s211 = scalar_lea.vmem [#allocation2], %s210
        %p212 = pneg %p61
        %p213 = pneg %p58
        %s214 = sand.u32 %s80, 1
        %s215 = scalar_lea.sflag [#allocation6], %s214
        %s216 = sand.u32 %s80, 1
        %s217 = smul.addr %s216, 16
        %s218 = scalar_lea.vmem [#allocation5], %s217
        %p219 = pneg %p93
        %p220 = pneg %p90
        %p221 = pneg %p119
        %p222 = pneg %p116
        %s223 = sand.u32 %s106, 1
        %s224 = scalar_lea.sflag [#allocation4], %s223
        %s225 = sand.u32 %s106, 1
        %s226 = smul.addr %s225, 16
        %s227 = scalar_lea.vmem [#allocation7], %s226
        %s228 = sadd.s32 %s26, %s27
        %p229 = scmp.lt.s32.totalorder %s228, 0
        %s230 = scalar_select %p229, %s228, 0
        %s231 = sadd.s32 %s26, %s27
        %p232 = scmp.lt.s32.totalorder %s231, 0
        %s233 = scalar_select %p232, %s231, 0
        %p234 = scmp.eq.s32.totalorder %s27, 0
        // Predicated region
        $region37: #{tpu_custom_call.1} parent=27 // pred_check
          %p235 = pneg %p234
        $region38: #{tpu_custom_call.1} parent=27 // pred_check_branch
          %237 = sbr.rel (%p235) target = $region40
        $region39: #{tpu_custom_call.1} parent=27 // pred_region
          %238 = vst [vmem:[%s227] sm:$0xff] 0.0
          %239 = vst [vmem:[%s227 + $0x8] sm:$0xff] 0.0
        $region40: #{tpu_custom_call.1} parent=27 // pred_fallthru
          _
        %v240 = vld [vmem:[%s193] sm:$0xff]
        %v241 = vld [vmem:[%s193 + $0x8] sm:$0xff]
        %v242 = vld [vmem:[%s202] sm:$0xff]
        %v243 = vld [vmem:[%s202 + $0x8] sm:$0xff]
        %s244 = sadd.s32 %s26, %s27
        %s245 = smul.u32 %s244, 4
        %s246 = ssub.s32 4, %s245
        %v247 = vlaneseq
        %v248 = vshrl.u32 %v247, 7
        %v249 = vstv %s246
        %vm250 = vcmp.lt.s32.totalorder %v248, %v249
        %v251 = vsel %vm250, 1, 0
        %vm252 = vcmp.eq.s32.totalorder %v251, 1
        %v255 = vcombine.high %v240, %v240
        %v256 = vcombine.high %v241, %v241
        %v259 = vsel %vm252, %v240, 1.0
        %v260 = vsel %vm252, %v255, 1.0
        %v261 = vsel %vm252, %v241, 1.0
        %v262 = vsel %vm252, %v256, 1.0
        %v265 = vcombine.high %v242, %v242
        %v266 = vcombine.high %v243, %v243
        %v269 = vsel %vm252, %v242, 1.0
        %v270 = vsel %vm252, %v265, 1.0
        %v271 = vsel %vm252, %v243, 1.0
        %v272 = vsel %vm252, %v266, 1.0
        %v273 = vlog2.pop %v259
        %v274 = vmul.f32 %v273, 0.6931472
        %v275 = vlog2.pop %v260
        %v276 = vmul.f32 %v275, 0.6931472
        %v277 = vlog2.pop %v261
        %v278 = vmul.f32 %v277, 0.6931472
        %v279 = vlog2.pop %v262
        %v280 = vmul.f32 %v279, 0.6931472
        %v281 = vmax.f32 %v274, -100.0
        %v282 = vmax.f32 %v276, -100.0
        %v283 = vmax.f32 %v278, -100.0
        %v284 = vmax.f32 %v280, -100.0
        %v285 = vsub.f32 1.0, %v259
        %v286 = vsub.f32 1.0, %v260
        %v287 = vsub.f32 1.0, %v261
        %v288 = vsub.f32 1.0, %v262
        %v289 = vlog2.pop %v285
        %v290 = vmul.f32 %v289, 0.6931472
        %v291 = vlog2.pop %v286
        %v292 = vmul.f32 %v291, 0.6931472
        %v293 = vlog2.pop %v287
        %v294 = vmul.f32 %v293, 0.6931472
        %v295 = vlog2.pop %v288
        %v296 = vmul.f32 %v295, 0.6931472
        %v297 = vmax.f32 %v290, -100.0
        %v298 = vmax.f32 %v292, -100.0
        %v299 = vmax.f32 %v294, -100.0
        %v300 = vmax.f32 %v296, -100.0
        %v301 = vsub.f32 %v281, %v297
        %v302 = vsub.f32 %v282, %v298
        %v303 = vsub.f32 %v283, %v299
        %v304 = vsub.f32 %v284, %v300
        %v305 = vmul.f32 %v269, %v301
        %v306 = vmul.f32 %v270, %v302
        %v307 = vmul.f32 %v271, %v303
        %v308 = vmul.f32 %v272, %v304
        %v309 = vadd.f32 %v305, %v297
        %v310 = vadd.f32 %v306, %v298
        %v311 = vadd.f32 %v307, %v299
        %v312 = vadd.f32 %v308, %v300
        %v313 = vsub.f32 0.0, %v309
        %v314 = vsub.f32 0.0, %v310
        %v315 = vsub.f32 0.0, %v311
        %v316 = vsub.f32 0.0, %v312
        %v317 = vld [vmem:[%s227] sm:$0xff]
        %v318 = vld [vmem:[%s227 + $0x8] sm:$0xff]
        %v323 = vcombine.low %v313, %v314
        %v324 = vcombine.low %v315, %v316
        %v327 = vadd.f32 %v317, %v323
        %v328 = vadd.f32 %v318, %v324
        %329 = vst [vmem:[%s227] sm:$0xff] %v327
        %330 = vst [vmem:[%s227 + $0x8] sm:$0xff] %v328
        %s331 = sand.u32 %s106, 1
        %s332 = scalar_lea.sflag [#allocation4], %s331
        %s333 = sand.u32 %s106, 1
        %s334 = smul.addr %s333, 16
        %s335 = scalar_lea.vmem [#allocation7], %s334
        // Predicated region
        $region41: #{tpu_custom_call.1} parent=27 // pred_check
          %p336 = pneg %p116
        $region42: #{tpu_custom_call.1} parent=27 // pred_check_branch
          %338 = sbr.rel (%p336) target = $region44
        $region43: #{tpu_custom_call.1} parent=27 // pred_region
          %s340 = ssub.s32 256, 256
          %341 = vsyncadd %s332, %s340
          %s342 = smul.addr %s26, 4
          %s343 = smul.addr %s342, 64
          %s344 = scalar_lea.hbm %s2, %s343
          %s346 = sshll.u32 %s335, 4
          %s347 = int_to_ptr.vmem [resolvable:$true] %s346
          %349 = dma.vmem_to_hbm [thread:$0]  %s347, 256, %s344, %s332
        $region44: #{tpu_custom_call.1} parent=27 // pred_fallthru
          _
      $region28: #{tpu_custom_call.1} parent=5 // pred_fallthru
        _
      %p350 = scmp.le.s32.totalorder 2, %s17
      // Predicated region
      $region45: #{tpu_custom_call.1} parent=5 // pred_check
        %p351 = pneg %p350
      $region46: #{tpu_custom_call.1} parent=5 // pred_check_branch
        %353 = sbr.rel (%p351) target = $region48
      $region47: #{tpu_custom_call.1} parent=5 // pred_region
        %s354 = ssub.s32 %s17, 2
        // Predicated region
        $region49: #{tpu_custom_call.1} parent=47 // pred_check
          %p355 = pneg %p122
        $region50: #{tpu_custom_call.1} parent=47 // pred_check_branch
          %357 = sbr.rel (%p355) target = $region52
        $region51: #{tpu_custom_call.1} parent=47 // pred_region
          %s358 = sand.u32 %s107, 1
          %s359 = scalar_lea.sflag [#allocation4], %s358
          %s360 = sand.u32 %s107, 1
          %s361 = smul.addr %s360, 16
          %s362 = scalar_lea.vmem [#allocation7], %s361
          %363 = dma.done %s359, 256
        $region52: #{tpu_custom_call.1} parent=47 // pred_fallthru
          _
      $region48: #{tpu_custom_call.1} parent=5 // pred_fallthru
        _
    $region6: #{tpu_custom_call.1} parent=1 // loop_footer
      %s21 = sadd.s32 1, %s17
    $region7: #{tpu_custom_call.1} parent=1 // loop_footer_branch
      %16 = sbr.rel target = $region3
    $region8: #{tpu_custom_call.1} parent=1 // loop_exit
      _
    %364 = vsyncpa [#allocation3], 1
    %s365 = scalar_lea.sflag [#allocation3], 1
    %366 = vsyncpa %s365, 1
    %367 = vsyncpa [#allocation6], 1
    %s368 = scalar_lea.sflag [#allocation6], 1
    %369 = vsyncpa %s368, 1
    %370 = vsyncpa [#allocation4], 1
    %s371 = scalar_lea.sflag [#allocation4], 1
    %372 = vsyncpa %s371, 1

</llo_original>
